<compile_context>
chip_gen: v7x
topology: tpu7x:2x2x1
jax: 0.10.0
libtpu: 0.0.40
codegen_flags: <defaults>
</compile_context>

<pallas_src>
import functools
import math

import jax
import jax.numpy as jnp
from jax.experimental import pallas as pl
from jax.experimental.pallas import tpu as pltpu

_LANE = 128
_DEF_TILE_BYTES = 8 * 1024 * 1024     # per-input-buffer budget (8-16 MiB ~ HBM roofline)
_VMEM_SOFT_CAP = 48 * 1024 * 1024     # leave headroom under v7x's 64 MiB per-TC VMEM
_ROW_TILE = 256                       # row-block size when rows is large
_MIN_SUBLANE_ROWS = {4: 8, 2: 16, 1: 32}   # min useful row count per vreg, by itemsize


def _round_up(x, m):
    return -(-x // m) * m


def _gp_sumsq_kernel(g_ref, out_ref, *, valid_cols, ragged):
    """Per-row sum-of-squares of the (packed) gradient.

    grid = (row_blocks 'parallel', lane_tiles 'arbitrary')
    g_ref:   [row_tile, tn] tile of the packed gradient (native dtype)
    out_ref: [row_tile, 1]  f32 per-row sum-of-squares; resident across the
             reduction axis (same block index for all k) -> used as accumulator.
    """
    k = pl.program_id(1)

    @pl.when(k == 0)
    def _init():
        out_ref[...] = jnp.zeros_like(out_ref)

    # Per-tile cast only (bf16 gradients stay bf16 in HBM; accumulate in f32).
    g = g_ref[...].astype(jnp.float32)
    if ragged:
        # Mask the lane tail (columns beyond the real array / past-the-end block
        # padding) instead of padding the gradient in HBM.
        col = jax.lax.broadcasted_iota(jnp.int32, g.shape, 1) + k * g.shape[1]
        g = jnp.where(col < valid_cols, g, 0.0)
    out_ref[...] += jnp.sum(g * g, axis=1, keepdims=True)


def gradient_penalty_from_grad(grad_interp, *, tile_bytes=_DEF_TILE_BYTES):
    """grad_interp: [B, ...] (any trailing shape/dtype) -> scalar gradient penalty."""
    b = grad_interp.shape[0]
    g = grad_interp.reshape(b, -1)                     # [B, N], native dtype
    n = g.shape[1]
    elem = g.dtype.itemsize

    # Sublane packing (dtype-aware, zero-copy): [B, N] -> [B*s, N/s] so rows fill
    # the vreg sublane tile.  Only when the reshape is an exact contiguous view;
    # packed row r belongs to sample r // s.
    sub = _MIN_SUBLANE_ROWS.get(elem, 8)
    s = sub // math.gcd(b, sub)
    if s > 1 and n % s != 0:
        s = 1                                          # fall back: no packing, no copy
    rows, cols = b * s, n // s
    g = g.reshape(rows, cols)

    # Row-block tiling: keeps per-row HBM runs long for large B and gives v7x a
    # 'parallel' axis to split across both TensorCores.
    if rows % 8 == 0 and rows > _ROW_TILE:
        row_tile = _ROW_TILE
    else:
        row_tile = rows
    n_row_blocks = pl.cdiv(rows, row_tile)

    # Lane tiling: divide cols evenly (padding bounded to <128 lanes per tile),
    # under both the tile-byte budget and the VMEM soft cap.
    lane_cap = max(_LANE, ((_VMEM_SOFT_CAP - (2 << 20)) //
                           (row_tile * (3 * elem + 8))) // _LANE * _LANE)
    tn_budget = max(_LANE, (tile_bytes // (row_tile * elem)) // _LANE * _LANE)
    tn_budget = min(tn_budget, lane_cap)
    if cols <= tn_budget:
        tn, n_tiles = cols, 1                          # single full-width block
    else:
        n_tiles = pl.cdiv(cols, tn_budget)
        tn = _round_up(pl.cdiv(cols, n_tiles), _LANE)
        n_tiles = pl.cdiv(cols, tn)
    ragged = n_tiles * tn != cols                      # mask in-kernel; never jnp.pad

    # Pipelining depth: a 3rd input buffer hides DMA-issue latency only for deep,
    # small-tile pipelines (big tiles stay double-buffered, esp. on v7x's 64 MiB VMEM).
    tile_in_bytes = row_tile * tn * elem
    buffers = 3 if (n_tiles >= 8 and tile_in_bytes <= 4 * 1024 * 1024) else 2
    if buffers != 2:
        in_spec = pl.BlockSpec((row_tile, tn), lambda i, k: (i, k),
                               pipeline_mode=pl.Buffered(buffers))
    else:
        in_spec = pl.BlockSpec((row_tile, tn), lambda i, k: (i, k))

    # buffers x native-dtype tile + ~2x f32 temporaries (cast / square) + headroom.
    vmem_need = buffers * tile_in_bytes + 2 * row_tile * tn * 4 + (2 << 20)
    vmem_limit = int(min(_VMEM_SOFT_CAP, max(32 << 20, vmem_need)))

    kernel = functools.partial(_gp_sumsq_kernel, valid_cols=cols, ragged=ragged)
    sumsq = pl.pallas_call(
        kernel,
        out_shape=jax.ShapeDtypeStruct((rows, 1), jnp.float32),
        grid_spec=pltpu.PrefetchScalarGridSpec(
            num_scalar_prefetch=0,
            grid=(n_row_blocks, n_tiles),
            in_specs=[in_spec],
            out_specs=pl.BlockSpec((row_tile, 1), lambda i, k: (i, 0)),
        ),
        compiler_params=pltpu.CompilerParams(
            dimension_semantics=("parallel", "arbitrary"),
            vmem_limit_bytes=vmem_limit,
        ),
    )(g)

    # Tiny epilogue over [rows] values: regroup packed rows per sample, sqrt, mean.
    per_sample = sumsq[:, 0]
    if s > 1:
        per_sample = per_sample.reshape(b, s).sum(axis=1)
    return jnp.mean((jnp.sqrt(per_sample) - 1.0) ** 2)


def critic(x, w):
    """Small deterministic 'critic' standing in for the external network that
    produced interp_crit in the PyTorch training graph.  x: [B,C,H,W] -> [B,1]."""
    b = x.shape[0]
    xf = x.reshape(b, -1)
    return jnp.tanh(xf @ w)


def gradient_penalty_loss(interp, w):
    """Forward-pass equivalent of GradientPenaltyLoss.forward.

    torch.autograd.grad(outputs=interp_crit, inputs=interp, grad_outputs=ones)
    == VJP of the critic at `interp` with a ones cotangent."""
    interp_crit, vjp_fn = jax.vjp(lambda x: critic(x, w), interp)
    grad_outputs = jnp.ones_like(interp_crit)          # get_grad_outputs(...)
    (grad_interp,) = vjp_fn(grad_outputs)              # torch.autograd.grad
    # TODO(synk): fuse the per-row sum-of-squares into the VJP's last backward
    # matmul epilogue (or emit grad_interp in bf16) so [B,N] never round-trips HBM.
    return gradient_penalty_from_grad(grad_interp)


if __name__ == "__main__":
    key = jax.random.PRNGKey(0)
    k_x, k_w, k_g1, k_g2 = jax.random.split(key, 4)

    B, C, H, W = 2, 4, 16, 16
    N = C * H * W

    interp = jax.random.normal(k_x, (B, C, H, W), dtype=jnp.float32)
    # Deterministic critic weights (synthetic; no checkpoint load).
    w_crit = jax.random.normal(k_w, (N, 1), dtype=jnp.float32) * 0.02

    loss = jax.block_until_ready(gradient_penalty_loss(interp, w_crit))

    # Pure-JAX reference of the full forward pass.
    _, vjp_fn = jax.vjp(lambda x: critic(x, w_crit), interp)
    (g_ref,) = vjp_fn(jnp.ones((B, 1), jnp.float32))

    def ref_loss(grad):
        gg = grad.reshape(grad.shape[0], -1).astype(jnp.float32)
        norms = jnp.sqrt(jnp.sum(gg * gg, axis=1))
        return jnp.mean((norms - 1.0) ** 2)

    assert jnp.allclose(loss, ref_loss(g_ref), rtol=1e-5, atol=1e-6), (loss, ref_loss(g_ref))

    # Multi-tile accumulation path (tiny tile budget -> reduction grid > 1).
    loss_tiled = jax.block_until_ready(
        gradient_penalty_from_grad(g_ref, tile_bytes=8 * 128 * 4))
    assert jnp.allclose(loss_tiled, ref_loss(g_ref), rtol=1e-5, atol=1e-6), loss_tiled

    # Ragged path: N not lane-aligned -> in-kernel tail mask, no host-side pad copy.
    g_rag = jax.random.normal(k_g1, (3, 5, 7, 11), dtype=jnp.float32) * 0.1
    loss_rag = jax.block_until_ready(
        gradient_penalty_from_grad(g_rag, tile_bytes=3 * 128 * 4))
    assert jnp.allclose(loss_rag, ref_loss(g_rag), rtol=1e-5, atol=1e-6), loss_rag

    # bf16 gradient: native-dtype HBM stream + dtype-aware sublane packing.
    g_bf = (jax.random.normal(k_g2, (4, 8, 32, 16), dtype=jnp.float32) * 0.05
            ).astype(jnp.bfloat16)
    loss_bf = jax.block_until_ready(
        gradient_penalty_from_grad(g_bf, tile_bytes=16 * 256 * 2))
    assert jnp.allclose(loss_bf, ref_loss(g_bf), rtol=1e-4, atol=1e-5), loss_bf

    print("KERNEL_OK")
</pallas_src>

<mosaic_0001>
module attributes {stable_mosaic.version = 11 : i64} {
  func.func @_gp_sumsq_kernel(%arg0: i32, %arg1: i32, %arg2: memref<8x256xf32, #tpu.memory_space<vmem>>, %arg3: memref<8x1xf32, #tpu.memory_space<vmem>>) attributes {dimension_semantics = [#tpu.dimension_semantics<parallel>, #tpu.dimension_semantics<arbitrary>], iteration_bounds = array<i64: 1, 1>, scalar_prefetch = 0 : i64, scratch_operands = 0 : i64, tpu.core_type = #tpu.core_type<tc>, window_params = [{transform_indices = @transform_0, window_bounds = array<i64: 8, 256>}, {transform_indices = @transform_1, window_bounds = array<i64: 8, 1>}]} {
    %c0_i32 = arith.constant 0 : i32
    %0 = arith.cmpi eq, %arg1, %c0_i32 : i32
    %1 = arith.extui %0 : i1 to i32
    %c0_i32_0 = arith.constant 0 : i32
    %2 = arith.cmpi ne, %1, %c0_i32_0 : i32
    scf.if %2 {
      %cst_6 = arith.constant 0.000000e+00 : f32
      %10 = vector.broadcast %cst_6 : f32 to vector<8x1xf32>
      %c0_7 = arith.constant 0 : index
      %c0_8 = arith.constant 0 : index
      %11 = vector.load %arg3[%c0_7, %c0_8] : memref<8x1xf32, #tpu.memory_space<vmem>>, vector<8x1xf32>
      tpu.vector_store %arg3[%c0_7, %c0_8], %10 {strides = array<i32>} : memref<8x1xf32, #tpu.memory_space<vmem>>, vector<8x1xf32>,
    } else {
    }
    %c0 = arith.constant 0 : index
    %c0_1 = arith.constant 0 : index
    %3 = vector.load %arg2[%c0, %c0_1] : memref<8x256xf32, #tpu.memory_space<vmem>>, vector<8x256xf32>
    %c0_2 = arith.constant 0 : index
    %c0_3 = arith.constant 0 : index
    %4 = vector.load %arg3[%c0_2, %c0_3] : memref<8x1xf32, #tpu.memory_space<vmem>>, vector<8x1xf32>
    %5 = arith.mulf %3, %3 : vector<8x256xf32>
    %cst = arith.constant dense<0.000000e+00> : vector<8xf32>
    %6 = vector.multi_reduction <add>, %5, %cst [1] : vector<8x256xf32> to vector<8xf32>
    %7 = vector.shape_cast %6 : vector<8xf32> to vector<8x1xf32>
    %8 = arith.addf %4, %7 : vector<8x1xf32>
    %c0_4 = arith.constant 0 : index
    %c0_5 = arith.constant 0 : index
    %9 = vector.load %arg3[%c0_4, %c0_5] : memref<8x1xf32, #tpu.memory_space<vmem>>, vector<8x1xf32>
    tpu.vector_store %arg3[%c0_4, %c0_5], %8 {strides = array<i32>} : memref<8x1xf32, #tpu.memory_space<vmem>>, vector<8x1xf32>,
    return
  }
  func.func @transform_0(%arg0: i32, %arg1: i32) -> (i32, i32) {
    %c0_i32 = arith.constant 0 : i32
    return %arg0, %arg1 : i32, i32
  }
  func.func @transform_1(%arg0: i32, %arg1: i32) -> (i32, i32) {
    %c0_i32 = arith.constant 0 : i32
    %c0_i32_0 = arith.constant 0 : i32
    return %arg0, %c0_i32 : i32, i32
  }
}

</mosaic_0001>

<llo_original>
// kernel: tpu_custom_call.1
$region0: #{tpu_custom_call.1}
  #allocation0 [shape = 'u32[]', space=smem, size = 0x4, offset = 0x4, fixed_abs, tag = 'smem constant byte address 0x4 - core index']
  #allocation1 [shape = 'u32[144,128]{1,0:T(1,128)}', space=vmem, size = 0x12000, scoped, tag = 'internal scratch']
  %s0 = inlined_call_operand.hbm [shape: f32[8,256], index: 0, kind: input, shape index: {}]
  %s1 = inlined_call_operand.vmem [shape: f32[8,1], index: 1, kind: output, shape index: {}]
  %s2 = sld [smem:[#allocation0]]
  $region22: #{tpu_custom_call.1} parent=0
    _
  %s4 = ssub.s32 1, %s2
  %s5 = scalar_select 0, %s4, %s2
  $region1: #{tpu_custom_call.1} parent=0
    #allocation2 [shape = 'u8[8192]{0}', space=vmem, size = 0x2000, scoped, tag = 'input window, operand 0, single buffered']
    #allocation3 [shape = 's32[1]{0}', space=sflag, size = 0x4, scoped, tag = 'scoped memory for tpu_custom_call.1']
    %6 = vsyncpa [#allocation3], 0
    // Predicated region
    $region2: #{tpu_custom_call.1} parent=1 // pred_check
      _
    $region3: #{tpu_custom_call.1} parent=1 // pred_check_branch
      %8 = sbr.rel (0) target = $region5
    $region4: #{tpu_custom_call.1} parent=1 // pred_region
      %s10 = ssub.s32 256, 256
      %11 = vsyncadd [#allocation3], %s10
      %s13 = sshll.u32 [#allocation2], 4
      %s14 = int_to_ptr.vmem [resolvable:$true] %s13
      %16 = dma.hbm_to_vmem [thread:$0]  %s0, 256, %s14, [#allocation3]
    $region5: #{tpu_custom_call.1} parent=1 // pred_fallthru
      _
    // Predicated region
    $region6: #{tpu_custom_call.1} parent=1 // pred_check
      _
    $region7: #{tpu_custom_call.1} parent=1 // pred_check_branch
      %18 = sbr.rel (0) target = $region9
    $region8: #{tpu_custom_call.1} parent=1 // pred_region
      %19 = dma.done [#allocation3], 256
    $region9: #{tpu_custom_call.1} parent=1 // pred_fallthru
      _
    %p20 = scmp.eq.s32.totalorder 0, 0
    // Predicated region
    $region10: #{tpu_custom_call.1} parent=1 // pred_check
      %p21 = pneg %p20
    $region11: #{tpu_custom_call.1} parent=1 // pred_check_branch
      %23 = sbr.rel (%p21) target = $region13
    $region12: #{tpu_custom_call.1} parent=1 // pred_region
      %vm24 = vcmask 7168
      %25 = vst.msk [vmem:[%s1] sm:$0xff] %vm24, 0.0
    $region13: #{tpu_custom_call.1} parent=1 // pred_fallthru
      _
    %v26 = vld [vmem:[#allocation2] sm:$0xff]
    %v27 = vld [vmem:[#allocation2 + $0x8] sm:$0xff]
    %v28 = vld [vmem:[%s1] sm:$0xff]
    %v29 = vmul.f32 %v26, %v26
    %v30 = vmul.f32 %v27, %v27
    %v31 = vadd.f32 %v29, %v30
    %32 = vadd.xlane.f32.xlu0 %v31
    %v33 = vpop.xlane.xlu0 %32
    %v34 = vadd.f32 %v28, %v33
    %vm35 = vcmask 7168
    %36 = vst.msk [vmem:[%s1] sm:$0xff] %vm35, %v34
    // Predicated region
    $region14: #{tpu_custom_call.1} parent=1 // pred_check
      _
    $region15: #{tpu_custom_call.1} parent=1 // pred_check_branch
      %38 = sbr.rel (0) target = $region17
    $region16: #{tpu_custom_call.1} parent=1 // pred_region
      _
    $region17: #{tpu_custom_call.1} parent=1 // pred_fallthru
      _
    // Predicated region
    $region18: #{tpu_custom_call.1} parent=1 // pred_check
      _
    $region19: #{tpu_custom_call.1} parent=1 // pred_check_branch
      %40 = sbr.rel (0) target = $region21
    $region20: #{tpu_custom_call.1} parent=1 // pred_region
      _
    $region21: #{tpu_custom_call.1} parent=1 // pred_fallthru
      _
    %41 = vsyncpa [#allocation3], 1

</llo_original>
